<compile_context>
chip_gen: v6e
topology: v6e:2x2x1
jax: 0.10.0
libtpu: 0.0.40
codegen_flags: <defaults>
</compile_context>

<pallas_src>
import numpy as np
import jax
import jax.numpy as jnp
from jax.experimental import pallas as pl
from jax.experimental.pallas import tpu as pltpu


def _noise_concat_kernel(wt_ref, img_ref, noise_ref, out_ref):
    # wt_ref: SMEM (1,) scalar weight; img/noise blocks: (B, C, HW);
    # out block: (B, 2, C, HW) -- slab 0 = image, slab 1 = weight * noise.
    w = wt_ref[0]
    out_ref[:, 0, :, :] = img_ref[...]
    out_ref[:, 1, :, :] = (w * noise_ref[...]).astype(out_ref.dtype)


def _noise_add_kernel(wt_ref, img_ref, noise_ref, out_ref):
    w = wt_ref[0]
    out_ref[...] = (img_ref[...] + w * noise_ref[...]).astype(out_ref.dtype)


def noise_injection_forward(image, weight, noise=None, *, isconcat=True, rng_key=None):
    """Pallas equivalent of NoiseInjection.forward."""
    B, C, H, W = image.shape
    HW = H * W

    if noise is None:
        # torch: image.new_empty(B, C, H, W).normal_() (torch RNG). We draw from
        # jax.random instead -- same distribution, different random stream.
        if rng_key is None:
            rng_key = jax.random.PRNGKey(0)
        noise = jax.random.normal(rng_key, image.shape, dtype=image.dtype)

    img2 = image.reshape(B, C, HW)   # lane axis = HW (256 = 2*128 -> lane-dense)
    noi2 = noise.reshape(B, C, HW)
    wt = jnp.asarray(weight, dtype=jnp.float32).reshape(1)

    smem_spec = pl.BlockSpec(memory_space=pltpu.MemorySpace.SMEM)
    vin_spec = pl.BlockSpec((B, C, HW), lambda i: (0, 0, 0))

    if isconcat:
        out = pl.pallas_call(
            _noise_concat_kernel,
            out_shape=jax.ShapeDtypeStruct((B, 2, C, HW), image.dtype),
            grid=(1,),
            in_specs=[smem_spec, vin_spec, vin_spec],
            out_specs=pl.BlockSpec((B, 2, C, HW), lambda i: (0, 0, 0, 0)),
            compiler_params=pltpu.CompilerParams(
                dimension_semantics=("arbitrary",)),
        )(wt, img2, noi2)
        # (B, 2, C, HW) -> (B, 2C, H, W): contiguous metadata reshape; this is
        # exactly torch.cat((image, weight*noise), dim=1).
        return out.reshape(B, 2 * C, H, W)
    else:
        out = pl.pallas_call(
            _noise_add_kernel,
            out_shape=jax.ShapeDtypeStruct((B, C, HW), image.dtype),
            grid=(1,),
            in_specs=[smem_spec, vin_spec, vin_spec],
            out_specs=pl.BlockSpec((B, C, HW), lambda i: (0, 0, 0)),
            compiler_params=pltpu.CompilerParams(
                dimension_semantics=("arbitrary",)),
        )(wt, img2, noi2)
        return out.reshape(B, C, H, W)


def ref_forward(image, weight, noise, isconcat=True):
    """Pure numpy reference mirroring the PyTorch module."""
    image = np.asarray(image, dtype=np.float32)
    noise = np.asarray(noise, dtype=np.float32)
    w = float(np.asarray(weight).reshape(()))
    wn = w * noise
    if isconcat:
        return np.concatenate([image, wn], axis=1)
    return image + wn


if __name__ == "__main__":
    B, C, H, W = 2, 4, 16, 16

    key = jax.random.PRNGKey(0)
    k1, k2, k3 = jax.random.split(key, 3)
    image = jax.random.normal(k1, (B, C, H, W), dtype=jnp.float32)
    noise = jax.random.normal(k2, (B, C, H, W), dtype=jnp.float32)
    # The module initializes weight to zeros; use a nonzero value so the
    # weight * noise path is actually exercised numerically.
    weight = jnp.asarray([0.37], dtype=jnp.float32)

    out_cat = noise_injection_forward(image, weight, noise, isconcat=True)
    out_add = noise_injection_forward(image, weight, noise, isconcat=False)
    jax.block_until_ready((out_cat, out_add))

    ref_cat = ref_forward(image, weight, noise, isconcat=True)
    ref_add = ref_forward(image, weight, noise, isconcat=False)
    np.testing.assert_allclose(np.asarray(out_cat), ref_cat, rtol=1e-6, atol=1e-6)
    np.testing.assert_allclose(np.asarray(out_add), ref_add, rtol=1e-6, atol=1e-6)

    # noise=None path (semantics/shape check; RNG stream differs from torch).
    out_none = noise_injection_forward(image, weight, None, isconcat=True, rng_key=k3)
    jax.block_until_ready(out_none)
    assert out_none.shape == (B, 2 * C, H, W)
    # First C channels must be the untouched image.
    np.testing.assert_allclose(np.asarray(out_none[:, :C]), np.asarray(image),
                               rtol=1e-6, atol=1e-6)

    print("KERNEL_OK")
</pallas_src>

<mosaic_0001>
module attributes {stable_mosaic.version = 11 : i64} {
  func.func @_noise_concat_kernel(%arg0: i32, %arg1: memref<1xf32, #tpu.memory_space<smem>>, %arg2: memref<2x4x256xf32, #tpu.memory_space<vmem>>, %arg3: memref<2x4x256xf32, #tpu.memory_space<vmem>>, %arg4: memref<2x2x4x256xf32, #tpu.memory_space<vmem>>) attributes {dimension_semantics = [#tpu.dimension_semantics<arbitrary>], iteration_bounds = array<i64: 1>, scalar_prefetch = 0 : i64, scratch_operands = 0 : i64, tpu.core_type = #tpu.core_type<tc>, window_params = [{transform_indices = @transform_0, window_bounds = array<i64: 1>}, {pipeline_mode = #tpu.pipeline_mode<synchronous>, transform_indices = @transform_1, window_bounds = array<i64: 2, 4, 256>}, {pipeline_mode = #tpu.pipeline_mode<synchronous>, transform_indices = @transform_2, window_bounds = array<i64: 2, 4, 256>}, {pipeline_mode = #tpu.pipeline_mode<synchronous>, transform_indices = @transform_3, window_bounds = array<i64: 2, 2, 4, 256>}]} {
    %c0 = arith.constant 0 : index
    %0 = memref.load %arg1[%c0] : memref<1xf32, #tpu.memory_space<smem>>
    %c0_0 = arith.constant 0 : index
    %c0_1 = arith.constant 0 : index
    %c0_2 = arith.constant 0 : index
    %1 = vector.load %arg2[%c0_0, %c0_1, %c0_2] : memref<2x4x256xf32, #tpu.memory_space<vmem>>, vector<2x4x256xf32>
    %c0_3 = arith.constant 0 : index
    %c0_4 = arith.constant 0 : index
    %c0_5 = arith.constant 0 : index
    %c0_6 = arith.constant 0 : index
    %2 = vector.load %arg4[%c0_3, %c0_4, %c0_5, %c0_6] : memref<2x2x4x256xf32, #tpu.memory_space<vmem>>, vector<2x1x4x256xf32>
    %3 = vector.shape_cast %2 : vector<2x1x4x256xf32> to vector<2x4x256xf32>
    %4 = vector.shape_cast %1 : vector<2x4x256xf32> to vector<2x1x4x256xf32>
    tpu.vector_store %arg4[%c0_3, %c0_4, %c0_5, %c0_6], %4 {strides = array<i32>} : memref<2x2x4x256xf32, #tpu.memory_space<vmem>>, vector<2x1x4x256xf32>,
    %c0_7 = arith.constant 0 : index
    %c0_8 = arith.constant 0 : index
    %c0_9 = arith.constant 0 : index
    %5 = vector.load %arg3[%c0_7, %c0_8, %c0_9] : memref<2x4x256xf32, #tpu.memory_space<vmem>>, vector<2x4x256xf32>
    %6 = vector.broadcast %0 : f32 to vector<2x4x256xf32>
    %7 = arith.mulf %6, %5 : vector<2x4x256xf32>
    %c0_10 = arith.constant 0 : index
    %c1 = arith.constant 1 : index
    %c0_11 = arith.constant 0 : index
    %c0_12 = arith.constant 0 : index
    %8 = vector.load %arg4[%c0_10, %c1, %c0_11, %c0_12] : memref<2x2x4x256xf32, #tpu.memory_space<vmem>>, vector<2x1x4x256xf32>
    %9 = vector.shape_cast %8 : vector<2x1x4x256xf32> to vector<2x4x256xf32>
    %10 = vector.shape_cast %7 : vector<2x4x256xf32> to vector<2x1x4x256xf32>
    tpu.vector_store %arg4[%c0_10, %c1, %c0_11, %c0_12], %10 {strides = array<i32>} : memref<2x2x4x256xf32, #tpu.memory_space<vmem>>, vector<2x1x4x256xf32>,
    return
  }
  func.func @transform_0(%arg0: i32) -> i32 {
    %c0_i32 = arith.constant 0 : i32
    %c0_i32_0 = arith.constant 0 : i32
    return %c0_i32 : i32
  }
  func.func @transform_1(%arg0: i32) -> (i32, i32, i32) {
    %c0_i32 = arith.constant 0 : i32
    %c0_i32_0 = arith.constant 0 : i32
    %c0_i32_1 = arith.constant 0 : i32
    %c0_i32_2 = arith.constant 0 : i32
    return %c0_i32, %c0_i32_0, %c0_i32_1 : i32, i32, i32
  }
  func.func @transform_2(%arg0: i32) -> (i32, i32, i32) {
    %c0_i32 = arith.constant 0 : i32
    %c0_i32_0 = arith.constant 0 : i32
    %c0_i32_1 = arith.constant 0 : i32
    %c0_i32_2 = arith.constant 0 : i32
    return %c0_i32, %c0_i32_0, %c0_i32_1 : i32, i32, i32
  }
  func.func @transform_3(%arg0: i32) -> (i32, i32, i32, i32) {
    %c0_i32 = arith.constant 0 : i32
    %c0_i32_0 = arith.constant 0 : i32
    %c0_i32_1 = arith.constant 0 : i32
    %c0_i32_2 = arith.constant 0 : i32
    %c0_i32_3 = arith.constant 0 : i32
    return %c0_i32, %c0_i32_0, %c0_i32_1, %c0_i32_2 : i32, i32, i32, i32
  }
}

</mosaic_0001>

<llo_original>
// kernel: tpu_custom_call.1
$region0: #{tpu_custom_call.1}
  #allocation0 [shape = 'u32[]', space=smem, size = 0x4, offset = 0x4, fixed_abs, tag = 'smem constant byte address 0x4 - core index']
  #allocation1 [shape = 'u32[144,128]{1,0:T(1,128)}', space=vmem, size = 0x12000, scoped, tag = 'internal scratch']
  #allocation2 [shape = 'f32[1]{0:T(128)S(6)}', space=smem, size = 0x200, scoped, tag = 'scoped memory for tpu_custom_call.1']
  %s0 = inlined_call_operand.<no memory space> [shape: f32[1], index: 0, kind: input, shape index: {}]
  %s1 = inlined_call_operand.hbm [shape: f32[2,4,256], index: 1, kind: input, shape index: {}]
  %s2 = inlined_call_operand.hbm [shape: f32[2,4,256], index: 2, kind: input, shape index: {}]
  %s3 = inlined_call_operand.hbm [shape: f32[2,2,4,256], index: 3, kind: output, shape index: {}]
  %s4 = sld [smem:[#allocation0]]
  $region30: #{tpu_custom_call.1} parent=0
    _
  %s6 = ssub.s32 1, %s4
  %s7 = scalar_select 0, %s6, %s4
  %8 = sst [smem:[#allocation2]] %s0
  $region1: #{tpu_custom_call.1} parent=0
    #allocation3 [shape = 'u8[8192]{0}', space=vmem, size = 0x2000, scoped, tag = 'input window, operand 1, single buffered']
    #allocation4 [shape = 's32[1]{0}', space=sflag, size = 0x4, scoped, tag = 'scoped memory for tpu_custom_call.1']
    #allocation5 [shape = 's32[1]{0}', space=sflag, size = 0x4, scoped, tag = 'scoped memory for tpu_custom_call.1']
    #allocation6 [shape = 'u8[8192]{0}', space=vmem, size = 0x2000, scoped, tag = 'input window, operand 2, single buffered']
    #allocation7 [shape = 's32[1]{0}', space=sflag, size = 0x4, scoped, tag = 'scoped memory for tpu_custom_call.1']
    #allocation8 [shape = 'u8[16384]{0}', space=vmem, size = 0x4000, scoped, tag = 'output window, operand 0, single buffered']
    %9 = vsyncpa [#allocation4], 0
    %10 = vsyncpa [#allocation7], 0
    %11 = vsyncpa [#allocation5], 0
    // Predicated region
    $region2: #{tpu_custom_call.1} parent=1 // pred_check
      _
    $region3: #{tpu_custom_call.1} parent=1 // pred_check_branch
      %13 = sbr.rel (0) target = $region5
    $region4: #{tpu_custom_call.1} parent=1 // pred_region
      _
    $region5: #{tpu_custom_call.1} parent=1 // pred_fallthru
      _
    // Predicated region
    $region6: #{tpu_custom_call.1} parent=1 // pred_check
      _
    $region7: #{tpu_custom_call.1} parent=1 // pred_check_branch
      %15 = sbr.rel (0) target = $region9
    $region8: #{tpu_custom_call.1} parent=1 // pred_region
      %s17 = ssub.s32 256, 256
      %18 = vsyncadd [#allocation4], %s17
      %s19 = sshll.u32 [#allocation3], 4
      %s20 = int_to_ptr.vmem [resolvable:$true] %s19
      %25 = dma.hbm_to_vmem [thread:$0]  %s1, 256, %s20, [#allocation4], 128, 128, 8
    $region9: #{tpu_custom_call.1} parent=1 // pred_fallthru
      _
    // Predicated region
    $region10: #{tpu_custom_call.1} parent=1 // pred_check
      _
    $region11: #{tpu_custom_call.1} parent=1 // pred_check_branch
      %27 = sbr.rel (0) target = $region13
    $region12: #{tpu_custom_call.1} parent=1 // pred_region
      %s29 = ssub.s32 256, 256
      %30 = vsyncadd [#allocation7], %s29
      %s31 = sshll.u32 [#allocation6], 4
      %s32 = int_to_ptr.vmem [resolvable:$true] %s31
      %37 = dma.hbm_to_vmem [thread:$0]  %s2, 256, %s32, [#allocation7], 128, 128, 8
    $region13: #{tpu_custom_call.1} parent=1 // pred_fallthru
      _
    // Predicated region
    $region14: #{tpu_custom_call.1} parent=1 // pred_check
      _
    $region15: #{tpu_custom_call.1} parent=1 // pred_check_branch
      %39 = sbr.rel (0) target = $region17
    $region16: #{tpu_custom_call.1} parent=1 // pred_region
      %40 = dma.done [#allocation4], 256
    $region17: #{tpu_custom_call.1} parent=1 // pred_fallthru
      _
    // Predicated region
    $region18: #{tpu_custom_call.1} parent=1 // pred_check
      _
    $region19: #{tpu_custom_call.1} parent=1 // pred_check_branch
      %42 = sbr.rel (0) target = $region21
    $region20: #{tpu_custom_call.1} parent=1 // pred_region
      %43 = dma.done [#allocation7], 256
    $region21: #{tpu_custom_call.1} parent=1 // pred_fallthru
      _
    %s44 = sld [smem:[#allocation2]]
    %v45 = vld [vmem:[#allocation3] sm:$0xff]
    %v46 = vld [vmem:[#allocation3 + $0x8] sm:$0xff]
    %47 = vst [vmem:[#allocation8] sm:$0xff] %v45
    %48 = vst [vmem:[#allocation8 + $0x10] sm:$0xff] %v46
    %v49 = vld [vmem:[#allocation6] sm:$0xff]
    %v50 = vld [vmem:[#allocation6 + $0x8] sm:$0xff]
    %v51 = vstv %s44
    %v52 = vmul.f32 %v51, %v49
    %v53 = vmul.f32 %v51, %v50
    %s54 = scalar_lea.vmem [#allocation8], 8
    %55 = vst [vmem:[%s54] sm:$0xff] %v52
    %56 = vst [vmem:[%s54 + $0x10] sm:$0xff] %v53
    // Predicated region
    $region22: #{tpu_custom_call.1} parent=1 // pred_check
      _
    $region23: #{tpu_custom_call.1} parent=1 // pred_check_branch
      %58 = sbr.rel (0) target = $region25
    $region24: #{tpu_custom_call.1} parent=1 // pred_region
      %s60 = ssub.s32 512, 512
      %61 = vsyncadd [#allocation5], %s60
      %s62 = sshll.u32 [#allocation8], 4
      %s63 = int_to_ptr.vmem [resolvable:$true] %s62
      %68 = dma.vmem_to_hbm [thread:$0]  %s63, 512, %s3, [#allocation5], 128, 128, 8
    $region25: #{tpu_custom_call.1} parent=1 // pred_fallthru
      _
    // Predicated region
    $region26: #{tpu_custom_call.1} parent=1 // pred_check
      _
    $region27: #{tpu_custom_call.1} parent=1 // pred_check_branch
      %70 = sbr.rel (0) target = $region29
    $region28: #{tpu_custom_call.1} parent=1 // pred_region
      %71 = dma.done [#allocation5], 512
    $region29: #{tpu_custom_call.1} parent=1 // pred_fallthru
      _
    %72 = vsyncpa [#allocation4], 1
    %73 = vsyncpa [#allocation7], 1
    %74 = vsyncpa [#allocation5], 1

</llo_original>
